<compile_context>
chip_gen: v5e
topology: v5e:2x2
jax: 0.10.0
libtpu: 0.0.40
codegen_flags: <defaults>
</compile_context>

<pallas_src>
from functools import partial

import jax
import jax.numpy as jnp
from jax import lax
from jax.experimental import pallas as pl
from jax.experimental.pallas import tpu as pltpu

_LANE = 128
_MAX_ROW_TILE = 1024
_MAX_HW_TILE = 64 * _LANE            # cap reduction-axis tile (bounds unrolled adds)
_DEFAULT_VMEM = 64 * 1024 * 1024     # conservative fallback (v7x per-TC VMEM)


def _round_up(a, b):
    return (a + b - 1) // b * b


def _sublane_for(dtype):
    # Packed-sublane tiling: f32 -> 8, bf16/f16 -> 16, int8/fp8 -> 32.
    itemsize = jnp.dtype(dtype).itemsize
    return max(8, 8 * (4 // itemsize))


_budget_cache = None


def _vmem_budget():
    """Generation-aware (per-buffer block bytes, scoped vmem limit)."""
    global _budget_cache
    if _budget_cache is None:
        try:
            info = pltpu.get_tpu_info()
            vmem = int(getattr(info, "vmem_capacity_bytes", 0)) or _DEFAULT_VMEM
        except Exception:
            vmem = _DEFAULT_VMEM
        block = max((vmem // 5) // (64 * 1024) * (64 * 1024), 2 * 1024 * 1024)
        limit = (vmem * 3) // 4
        _budget_cache = (block, limit)
    return _budget_cache


def _choose_tiles(nc, hw, elem_bytes, block_bytes, sublane):
    """Pick (row_tile, hw_block, num_hw_blocks) against the per-buffer budget.

    VMEM footprint is budgeted against the lane-padded width, since that is
    what the tile physically occupies.
    """
    hw_pad = _round_up(hw, _LANE)
    nc_pad = _round_up(nc, sublane)

    target_rows = min(_MAX_ROW_TILE, nc_pad)
    # Megacore balance: keep at least 2 row blocks so the "parallel" grid axis
    # can be split across v7x's two TensorCores. Costs <= one extra grid step
    # on single-TC v5e/v6e, so apply unconditionally.
    if nc_pad >= 2 * sublane:
        target_rows = min(target_rows, _round_up(pl.cdiv(nc_pad, 2), sublane))

    # Rows that fit the budget if one block covers the full (padded) H*W.
    rows_full = (block_bytes // (hw_pad * elem_bytes)) // sublane * sublane

    if rows_full >= min(target_rows, 256):
        # Common case: full H*W in a single block, as many rows as useful.
        return min(rows_full, target_rows), hw_pad, 1

    # Very large feature maps: fix the row tile and tile H*W (reduction axis).
    row_tile = min(256, target_rows)
    hw_tile = (block_bytes // (row_tile * elem_bytes)) // _LANE * _LANE
    hw_tile = max(_LANE, min(hw_tile, hw_pad, _MAX_HW_TILE))
    if hw_tile >= hw_pad:
        return row_tile, hw_pad, 1
    return row_tile, hw_tile, pl.cdiv(hw, hw_tile)


def _mask_cols(xp, start_col, hw_total):
    # Zero out-of-range lanes via a select (kills any NaN/Inf from stale pad data).
    col = start_col + lax.broadcasted_iota(jnp.int32, xp.shape, 1)
    return jnp.where(col < hw_total, xp, 0.0)


def _gem_kernel_single(p_ref, x_ref, o_ref, *, eps, hw_total, need_mask):
    # Single HW block per row block: reduce and store directly (no scratch).
    p = p_ref[0]
    x = jnp.maximum(x_ref[...].astype(jnp.float32), eps)      # clamp(min=eps)
    is_p3 = jnp.abs(p - 3.0) < 1e-6
    inv_hw = 1.0 / hw_total

    def reduce_store(xp):
        if need_mask:                                          # static: HW % 128 != 0
            xp = _mask_cols(xp, 0, hw_total)
        m = jnp.sum(xp, axis=-1, keepdims=True) * inv_hw       # mean over H*W
        o_ref[...] = jnp.power(m, 1.0 / p).astype(o_ref.dtype)

    @pl.when(is_p3)   # default p=3: VALU multiply chain, no EUP on the hot path
    def _():
        reduce_store(x * x * x)

    @pl.when(jnp.logical_not(is_p3))
    def _():
        reduce_store(jnp.power(x, p))


def _gem_kernel_multi(p_ref, x_ref, o_ref, acc_ref, *, eps, hw_total, hw_tile, need_mask):
    # HW-tiled path: (row_tile, 128) f32 accumulator across the HW grid axis.
    k = pl.program_id(1)
    last = pl.num_programs(1) - 1

    @pl.when(k == 0)
    def _():
        acc_ref[...] = jnp.zeros_like(acc_ref)

    p = p_ref[0]
    x = jnp.maximum(x_ref[...].astype(jnp.float32), eps)
    is_p3 = jnp.abs(p - 3.0) < 1e-6
    n_slices = hw_tile // _LANE

    def accumulate(xp):
        # Lane-wise partial sums: plain VALU adds per block; the single
        # cross-lane (XLU) reduce is deferred to the finalize step.
        part = xp[:, 0:_LANE]
        for j in range(1, n_slices):
            part = part + xp[:, j * _LANE:(j + 1) * _LANE]
        acc_ref[...] += part

    if need_mask:
        not_last = k != last
        is_last = k == last

        @pl.when(jnp.logical_and(is_p3, not_last))
        def _():
            accumulate(x * x * x)

        @pl.when(jnp.logical_and(is_p3, is_last))
        def _():
            accumulate(_mask_cols(x * x * x, k * hw_tile, hw_total))

        @pl.when(jnp.logical_and(jnp.logical_not(is_p3), not_last))
        def _():
            accumulate(jnp.power(x, p))

        @pl.when(jnp.logical_and(jnp.logical_not(is_p3), is_last))
        def _():
            accumulate(_mask_cols(jnp.power(x, p), k * hw_tile, hw_total))
    else:
        @pl.when(is_p3)
        def _():
            accumulate(x * x * x)

        @pl.when(jnp.logical_not(is_p3))
        def _():
            accumulate(jnp.power(x, p))

    @pl.when(k == last)
    def _():
        m = jnp.sum(acc_ref[...], axis=-1, keepdims=True) * (1.0 / hw_total)
        o_ref[...] = jnp.power(m, 1.0 / p).astype(o_ref.dtype)


def gem_pallas(x, p, eps=1e-6, block_bytes=None):
    """GeM pooling. x: (N, C, H, W); p: (1,) learnable exponent. Returns (N, C, 1, 1)."""
    N, C, H, W = x.shape
    NC, HW = N * C, H * W
    x2 = x.reshape(NC, HW)                 # free reshape, no HBM copy, no pad

    elem_bytes = jnp.dtype(x2.dtype).itemsize
    sublane = _sublane_for(x2.dtype)
    auto_block, vmem_limit = _vmem_budget()
    if block_bytes is None:
        block_bytes = auto_block

    row_tile, hw_blk, n_hw = _choose_tiles(NC, HW, elem_bytes, block_bytes, sublane)
    n_rows = pl.cdiv(NC, row_tile)

    cost = pl.CostEstimate(
        flops=3 * NC * HW,
        transcendentals=2 * NC * HW + 2 * NC,   # worst case (non-integer p)
        bytes_accessed=NC * HW * elem_bytes + NC * elem_bytes,
    )

    p32 = p.astype(jnp.float32).reshape((1,))

    if n_hw == 1:
        kernel = partial(_gem_kernel_single, eps=float(eps), hw_total=HW,
                         need_mask=(hw_blk != HW))
        grid_spec = pltpu.PrefetchScalarGridSpec(
            num_scalar_prefetch=1,
            grid=(n_rows,),
            in_specs=[pl.BlockSpec((row_tile, hw_blk), lambda i, p_sm: (i, 0))],
            out_specs=pl.BlockSpec((row_tile, 1), lambda i, p_sm: (i, 0)),
            scratch_shapes=[],
        )
        dims = ("parallel",)
    else:
        kernel = partial(_gem_kernel_multi, eps=float(eps), hw_total=HW,
                         hw_tile=hw_blk, need_mask=(HW % hw_blk != 0))
        grid_spec = pltpu.PrefetchScalarGridSpec(
            num_scalar_prefetch=1,
            grid=(n_rows, n_hw),
            in_specs=[pl.BlockSpec((row_tile, hw_blk), lambda i, k, p_sm: (i, k))],
            out_specs=pl.BlockSpec((row_tile, 1), lambda i, k, p_sm: (i, 0)),
            scratch_shapes=[pltpu.VMEM((row_tile, _LANE), jnp.float32)],
        )
        dims = ("parallel", "arbitrary")

    out = pl.pallas_call(
        kernel,
        out_shape=jax.ShapeDtypeStruct((NC, 1), x.dtype),
        grid_spec=grid_spec,
        compiler_params=pltpu.CompilerParams(
            dimension_semantics=dims,
            vmem_limit_bytes=int(vmem_limit),
        ),
        cost_estimate=cost,
    )(p32, x2)

    return out.reshape(N, C, 1, 1)


def gem_reference(x, p, eps=1e-6):
    # Pure-JAX reference mirroring F.avg_pool2d(x.clamp(eps)**p, (H, W))**(1/p),
    # computed in f32 (matching the kernel's internal accumulation dtype).
    xf = x.astype(jnp.float32)
    pf = p.astype(jnp.float32)[0]
    xc = jnp.maximum(xf, eps) ** pf
    m = jnp.mean(xc, axis=(-2, -1), keepdims=True)
    return (m ** (1.0 / pf)).astype(x.dtype)


def _check(x, p_param, eps, rtol=1e-4, atol=1e-5, **kwargs):
    y = jax.block_until_ready(gem_pallas(x, p_param, eps=eps, **kwargs))
    y_ref = gem_reference(x, p_param, eps=eps)
    assert y.shape == y_ref.shape and y.dtype == y_ref.dtype
    assert jnp.allclose(y.astype(jnp.float32), y_ref.astype(jnp.float32),
                        rtol=rtol, atol=atol)


if __name__ == "__main__":
    key = jax.random.PRNGKey(0)
    k0, k1, k2, k3, k4 = jax.random.split(key, 5)

    # Deterministic parameter init, matching GeM.__init__: p = ones(1) * 3
    p_param = jnp.ones((1,), dtype=jnp.float32) * 3.0
    eps = 1e-6

    # Primary small case from the spec: (N, C, H, W) = (2, 4, 16, 16)
    x = jax.random.normal(k0, (2, 4, 16, 16), dtype=jnp.float32)
    _check(x, p_param, eps)

    # Ragged row count (NC not a multiple of the row tile) + megacore row split.
    x2 = jax.random.normal(k1, (3, 5, 16, 16), dtype=jnp.float32)
    _check(x2, p_param, eps)

    # Lane-unaligned spatial extent (HW = 225) on the single-block path: block
    # is lane-padded to 256 and the pad lanes are masked in-kernel.
    x3 = jax.random.normal(k2, (2, 64, 15, 15), dtype=jnp.float32)
    _check(x3, p_param, eps)

    # Force the HW-tiled wide-accumulator path with a tiny per-buffer budget.
    _check(x3, p_param, eps, block_bytes=32 * 1024)

    # bf16 input: exercises 16-row packed-sublane tiling (f32 math inside).
    x4 = jax.random.normal(k3, (2, 24, 8, 8), dtype=jnp.float32).astype(jnp.bfloat16)
    _check(x4, p_param, eps, rtol=2e-2, atol=2e-2)

    # Non-integer p exercises the general exp/log power branch.
    p_frac = jnp.ones((1,), dtype=jnp.float32) * 2.5
    x5 = jax.random.normal(k4, (2, 8, 16, 16), dtype=jnp.float32)
    _check(x5, p_frac, eps)

    print("KERNEL_OK")
</pallas_src>

<mosaic_0001>
module attributes {stable_mosaic.version = 11 : i64} {
  func.func @_gem_kernel_single(%arg0: i32, %arg1: memref<1xf32, #tpu.memory_space<smem>>, %arg2: memref<8x256xf32, #tpu.memory_space<vmem>>, %arg3: memref<8x1xf32, #tpu.memory_space<vmem>>) attributes {dimension_semantics = [#tpu.dimension_semantics<parallel>], iteration_bounds = array<i64: 1>, scalar_prefetch = 1 : i64, scratch_operands = 0 : i64, tpu.core_type = #tpu.core_type<tc>, window_params = [{transform_indices = @transform_0, window_bounds = array<i64: 8, 256>}, {transform_indices = @transform_1, window_bounds = array<i64: 8, 1>}]} {
    %c0 = arith.constant 0 : index
    %0 = memref.load %arg1[%c0] : memref<1xf32, #tpu.memory_space<smem>>
    %c0_0 = arith.constant 0 : index
    %c0_1 = arith.constant 0 : index
    %1 = vector.load %arg2[%c0_0, %c0_1] : memref<8x256xf32, #tpu.memory_space<vmem>>, vector<8x256xf32>
    %cst = arith.constant 9.99999997E-7 : f32
    %2 = vector.broadcast %cst : f32 to vector<8x256xf32>
    %3 = arith.maximumf %1, %2 : vector<8x256xf32>
    %cst_2 = arith.constant 3.000000e+00 : f32
    %4 = arith.subf %0, %cst_2 : f32
    %5 = math.absf %4 : f32
    %cst_3 = arith.constant 9.99999997E-7 : f32
    %6 = arith.cmpf olt, %5, %cst_3 : f32
    %7 = arith.extui %6 : i1 to i32
    %c0_i32 = arith.constant 0 : i32
    %8 = arith.cmpi ne, %7, %c0_i32 : i32
    scf.if %8 {
      %12 = arith.mulf %3, %3 : vector<8x256xf32>
      %13 = arith.mulf %12, %3 : vector<8x256xf32>
      %cst_5 = arith.constant dense<0.000000e+00> : vector<8xf32>
      %14 = vector.multi_reduction <add>, %13, %cst_5 [1] : vector<8x256xf32> to vector<8xf32>
      %15 = vector.shape_cast %14 : vector<8xf32> to vector<8x1xf32>
      %cst_6 = arith.constant 3.906250e-03 : f32
      %16 = vector.broadcast %cst_6 : f32 to vector<8x1xf32>
      %17 = arith.mulf %15, %16 : vector<8x1xf32>
      %cst_7 = arith.constant 1.000000e+00 : f32
      %18 = arith.divf %cst_7, %0 : f32
      %19 = vector.broadcast %18 : f32 to vector<8x1xf32>
      %20 = math.powf %17, %19 : vector<8x1xf32>
      %c0_8 = arith.constant 0 : index
      %c0_9 = arith.constant 0 : index
      %21 = vector.load %arg3[%c0_8, %c0_9] : memref<8x1xf32, #tpu.memory_space<vmem>>, vector<8x1xf32>
      tpu.vector_store %arg3[%c0_8, %c0_9], %20 {strides = array<i32>} : memref<8x1xf32, #tpu.memory_space<vmem>>, vector<8x1xf32>,
    } else {
    }
    %true = arith.constant true
    %9 = arith.xori %6, %true : i1
    %10 = arith.extui %9 : i1 to i32
    %c0_i32_4 = arith.constant 0 : i32
    %11 = arith.cmpi ne, %10, %c0_i32_4 : i32
    scf.if %11 {
      %12 = vector.broadcast %0 : f32 to vector<8x256xf32>
      %13 = math.powf %3, %12 : vector<8x256xf32>
      %cst_5 = arith.constant dense<0.000000e+00> : vector<8xf32>
      %14 = vector.multi_reduction <add>, %13, %cst_5 [1] : vector<8x256xf32> to vector<8xf32>
      %15 = vector.shape_cast %14 : vector<8xf32> to vector<8x1xf32>
      %cst_6 = arith.constant 3.906250e-03 : f32
      %16 = vector.broadcast %cst_6 : f32 to vector<8x1xf32>
      %17 = arith.mulf %15, %16 : vector<8x1xf32>
      %cst_7 = arith.constant 1.000000e+00 : f32
      %18 = arith.divf %cst_7, %0 : f32
      %19 = vector.broadcast %18 : f32 to vector<8x1xf32>
      %20 = math.powf %17, %19 : vector<8x1xf32>
      %c0_8 = arith.constant 0 : index
      %c0_9 = arith.constant 0 : index
      %21 = vector.load %arg3[%c0_8, %c0_9] : memref<8x1xf32, #tpu.memory_space<vmem>>, vector<8x1xf32>
      tpu.vector_store %arg3[%c0_8, %c0_9], %20 {strides = array<i32>} : memref<8x1xf32, #tpu.memory_space<vmem>>, vector<8x1xf32>,
    } else {
    }
    return
  }
  func.func @transform_0(%arg0: i32, %arg1: memref<1xf32, #tpu.memory_space<smem>>) -> (i32, i32) {
    %c0_i32 = arith.constant 0 : i32
    %c0_i32_0 = arith.constant 0 : i32
    return %arg0, %c0_i32 : i32, i32
  }
  func.func @transform_1(%arg0: i32, %arg1: memref<1xf32, #tpu.memory_space<smem>>) -> (i32, i32) {
    %c0_i32 = arith.constant 0 : i32
    %c0_i32_0 = arith.constant 0 : i32
    return %arg0, %c0_i32 : i32, i32
  }
}

</mosaic_0001>

<llo_original>
// kernel: tpu_custom_call.1
$region0: #{tpu_custom_call.1}
  #allocation0 [shape = 'u32[]', space=smem, size = 0x4, offset = 0x4, fixed_abs, tag = 'smem constant byte address 0x4 - core index']
  #allocation1 [shape = 'u32[72,128]{1,0:T(1,128)}', space=vmem, size = 0x9000, scoped, tag = 'internal scratch']
  #allocation2 [shape = 's32[1]{0}', space=sflag, size = 0x4, scoped, tag = 'scoped memory for tpu_custom_call.1']
  #allocation3 [shape = 'f32[1]{0:T(128)S(6)}', space=smem, size = 0x200, scoped, tag = 'prefetched SMEM operand 0']
  %s0 = inlined_call_operand.<no memory space> [shape: f32[1], index: 0, kind: input, shape index: {}]
  %s1 = inlined_call_operand.hbm [shape: f32[8,256], index: 1, kind: input, shape index: {}]
  %s2 = inlined_call_operand.vmem [shape: f32[8,1], index: 2, kind: output, shape index: {}]
  %s3 = sld [smem:[#allocation0]]
  $region26: #{tpu_custom_call.1} parent=0
    _
  %s5 = ssub.s32 1, %s3
  %s6 = scalar_select 0, %s5, %s3
  %7 = sst [smem:[#allocation3]] %s0
  $region1: #{tpu_custom_call.1} parent=0
    #allocation4 [shape = 'u8[8192]{0}', space=vmem, size = 0x2000, scoped, tag = 'input window, operand 1, single buffered']
    #allocation5 [shape = 's32[1]{0}', space=sflag, size = 0x4, scoped, tag = 'scoped memory for tpu_custom_call.1']
    %8 = vsyncpa [#allocation5], 0
    // Predicated region
    $region2: #{tpu_custom_call.1} parent=1 // pred_check
      _
    $region3: #{tpu_custom_call.1} parent=1 // pred_check_branch
      %10 = sbr.rel (0) target = $region5
    $region4: #{tpu_custom_call.1} parent=1 // pred_region
      %12 = vsyncadd [#allocation5], 0
      %s14 = sshll.u32 %s1, 4
      %s15 = int_to_ptr.hbm [resolvable:$true] %s14
      %s16 = sshll.u32 [#allocation4], 4
      %s17 = int_to_ptr.vmem [resolvable:$true] %s16
      %19 = dma.hbm_to_vmem [thread:$0]  %s15, 256, %s17, [#allocation5]
    $region5: #{tpu_custom_call.1} parent=1 // pred_fallthru
      _
    // Predicated region
    $region6: #{tpu_custom_call.1} parent=1 // pred_check
      _
    $region7: #{tpu_custom_call.1} parent=1 // pred_check_branch
      %21 = sbr.rel (0) target = $region9
    $region8: #{tpu_custom_call.1} parent=1 // pred_region
      %23 = dma.done [#allocation5], 256
    $region9: #{tpu_custom_call.1} parent=1 // pred_fallthru
      _
    %s24 = sld [smem:[#allocation3]]
    %v25 = vld [vmem:[#allocation4] sm:$0xff]
    %v26 = vld [vmem:[#allocation4 + $0x8] sm:$0xff]
    %v27 = vmax.f32 %v25, 1e-06
    %v28 = vmax.f32 %v26, 1e-06
    %s29 = ssub.f32 %s24, 3.0
    %s30 = sand.u32 2147483647, %s29
    %p31 = scmp.lt.f32.partialorder %s30, 1e-06
    // Predicated region
    $region10: #{tpu_custom_call.1} parent=1 // pred_check
      %p32 = pneg %p31
    $region11: #{tpu_custom_call.1} parent=1 // pred_check_branch
      %34 = sbr.rel (%p32) target = $region13
    $region12: #{tpu_custom_call.1} parent=1 // pred_region
      %v35 = vmul.f32 %v27, %v27
      %v36 = vmul.f32 %v28, %v28
      %v37 = vmul.f32 %v35, %v27
      %v38 = vmul.f32 %v36, %v28
      %v39 = vadd.f32 %v37, %v38
      %40 = vadd.xlane.f32.xlu0 %v39
      %v41 = vpop.xlane.xlu0 %40
      %v42 = vmul.f32 %v41, 0.00390625
      %v43 = vstv %s24
      %v44 = vrcp.pop %v43
      %v45 = vmul.f32 %v43, %v44
      %v46 = vsub.f32 1.0, %v45
      %v47 = vmul.f32 %v44, %v46
      %v48 = vadd.f32 %v44, %v47
      %vm49 = vweird.f32 %v43
      %vm50 = vweird.f32 %v44
      %vm51 = vmor %vm49, %vm50
      %v52 = vsel %vm51, %v44, %v48
      %v53 = vand.u32 2147483647, %v43
      %vm54 = vcmp.eq.f32.partialorder %v53, 8.507059e+37
      %v55 = vand.u32 %v43, 2147483648
      %v56 = vor.u32 1.1754944e-38, %v55
      %v57 = vsel %vm54, %v56, %v52
      %s58 = vtos %v57
      %v59 = vstv %s58
      %v60 = vpow.f32 %v42, %v59
      %vm61 = vcmask 7168
      %62 = vst.msk [vmem:[%s2] sm:$0xff] %vm61, %v60
    $region13: #{tpu_custom_call.1} parent=1 // pred_fallthru
      _
    %p63 = pneg %p31
    // Predicated region
    $region14: #{tpu_custom_call.1} parent=1 // pred_check
      _
    $region15: #{tpu_custom_call.1} parent=1 // pred_check_branch
      %65 = sbr.rel (%p31) target = $region17
    $region16: #{tpu_custom_call.1} parent=1 // pred_region
      %v66 = vstv %s24
      %v67 = vpow.f32 %v27, %v66
      %v68 = vpow.f32 %v28, %v66
      %v69 = vadd.f32 %v67, %v68
      %70 = vadd.xlane.f32.xlu0 %v69
      %v71 = vpop.xlane.xlu0 %70
      %v72 = vmul.f32 %v71, 0.00390625
      %v73 = vstv %s24
      %v74 = vrcp.pop %v73
      %v75 = vmul.f32 %v73, %v74
      %v76 = vsub.f32 1.0, %v75
      %v77 = vmul.f32 %v74, %v76
      %v78 = vadd.f32 %v74, %v77
      %vm79 = vweird.f32 %v73
      %vm80 = vweird.f32 %v74
      %vm81 = vmor %vm79, %vm80
      %v82 = vsel %vm81, %v74, %v78
      %v83 = vand.u32 2147483647, %v73
      %vm84 = vcmp.eq.f32.partialorder %v83, 8.507059e+37
      %v85 = vand.u32 %v73, 2147483648
      %v86 = vor.u32 1.1754944e-38, %v85
      %v87 = vsel %vm84, %v86, %v82
      %s88 = vtos %v87
      %v89 = vstv %s88
      %v90 = vpow.f32 %v72, %v89
      %vm91 = vcmask 7168
      %92 = vst.msk [vmem:[%s2] sm:$0xff] %vm91, %v90
    $region17: #{tpu_custom_call.1} parent=1 // pred_fallthru
      _
    // Predicated region
    $region18: #{tpu_custom_call.1} parent=1 // pred_check
      _
    $region19: #{tpu_custom_call.1} parent=1 // pred_check_branch
      %94 = sbr.rel (0) target = $region21
    $region20: #{tpu_custom_call.1} parent=1 // pred_region
      _
    $region21: #{tpu_custom_call.1} parent=1 // pred_fallthru
      _
    // Predicated region
    $region22: #{tpu_custom_call.1} parent=1 // pred_check
      _
    $region23: #{tpu_custom_call.1} parent=1 // pred_check_branch
      %96 = sbr.rel (0) target = $region25
    $region24: #{tpu_custom_call.1} parent=1 // pred_region
      _
    $region25: #{tpu_custom_call.1} parent=1 // pred_fallthru
      _
    %97 = vsyncpa [#allocation5], 1

</llo_original>
